<compile_context>
chip_gen: v7x
topology: tpu7x:2x2x1
jax: 0.10.0
libtpu: 0.0.40
codegen_flags: <defaults>
</compile_context>

<pallas_src>
import functools
import math

import jax
import jax.numpy as jnp
import numpy as np
from jax.experimental import pallas as pl
from jax.experimental.pallas import tpu as pltpu


# ---------------------------------------------------------------------------
# Host-side constants (shapes / params only)
# ---------------------------------------------------------------------------
def _round_up(a: int, m: int) -> int:
    return ((a + m - 1) // m) * m


def _interp_matrix(out_size: int, in_size: int) -> jnp.ndarray:
    """Bilinear (align_corners=True) 1-D interpolation matrix, shape (out, in)."""
    if in_size == 1:
        return jnp.ones((out_size, 1), jnp.float32)
    if out_size == 1:
        return jnp.zeros((1, in_size), jnp.float32).at[0, 0].set(1.0)
    src = jnp.arange(out_size, dtype=jnp.float32) * (in_size - 1) / (out_size - 1)
    lo = jnp.clip(jnp.floor(src).astype(jnp.int32), 0, in_size - 2)
    frac = src - lo.astype(jnp.float32)
    rows = jnp.arange(out_size)
    w = jnp.zeros((out_size, in_size), jnp.float32)
    w = w.at[rows, lo].add(1.0 - frac)
    w = w.at[rows, lo + 1].add(frac)
    return w


def _adaptive_windows(in_size: int, out_size: int):
    """Static (start, end) window bounds of AdaptiveMaxPool, PyTorch semantics."""
    return tuple(
        (int(math.floor(i * in_size / out_size)),
         int(math.ceil((i + 1) * in_size / out_size)))
        for i in range(out_size)
    )


def _build_selection(h_wins, w_wins, W, L, Kp, dtype):
    """0/1 selection matrices compacting window maxima (at lane hs*W+ws) into
    pooled column k = ih*nW + iw, grouped by distinct window shape (nh, nw)."""
    n_w = len(w_wins)
    variants, mats, index = [], [], {}
    for ih, (hs, he) in enumerate(h_wins):
        for iw, (ws, we) in enumerate(w_wins):
            key = (he - hs, we - ws)
            if key not in index:
                index[key] = len(variants)
                variants.append(key)
                mats.append(np.zeros((L, Kp), np.float32))
            mats[index[key]][hs * W + ws, ih * n_w + iw] = 1.0
    sel = jnp.asarray(np.stack(mats, axis=0)).astype(dtype)
    return sel, tuple(variants)


@functools.lru_cache(maxsize=1)
def _roll_shifts_up() -> bool:
    """Probe pltpu.roll's direction once (tiny kernel) so the rolled window-max
    construction is convention-proof. True == jnp.roll convention."""
    def _probe(x_ref, o_ref):
        o_ref[...] = pltpu.roll(x_ref[...], 1, axis=1)

    x = jnp.broadcast_to(jnp.arange(128, dtype=jnp.float32)[None, :], (8, 128))
    y = pl.pallas_call(_probe,
                       out_shape=jax.ShapeDtypeStruct((8, 128), jnp.float32))(x)
    return bool(jax.device_get(y)[0, 0] == 127.0)


# ---------------------------------------------------------------------------
# In-kernel helpers: rolled prefix-max pooling + MXU compaction
# ---------------------------------------------------------------------------
def _roll_lanes(a, shift, length, shifts_up):
    """out[..., i] = a[..., (i + shift) % length]  (circular, along lanes)."""
    s = shift % length
    if s == 0:
        return a
    amt = (length - s) if shifts_up else s
    return pltpu.roll(a, amt, axis=a.ndim - 1)


def _window_max(a, sizes, stride, length, shifts_up):
    """For each n in sizes: out[n][..., i] = max_{0<=t<n} a[..., i + t*stride].
    Built with log2-depth rolls shared across all windows (VPU max + XLU roll)."""
    maxn = max(sizes)
    pows = {1: a}
    p = 1
    while 2 * p <= maxn:
        prev = pows[p]
        pows[2 * p] = jnp.maximum(prev, _roll_lanes(prev, p * stride, length, shifts_up))
        p *= 2
    out = {}
    for n in sizes:
        q = 1 << (int(n).bit_length() - 1)
        if q == n:
            out[n] = pows[q]
        else:
            out[n] = jnp.maximum(
                pows[q], _roll_lanes(pows[q], (n - q) * stride, length, shifts_up))
    return out


def _pool_compact(a, sel_ref, variants, *, W, length, shifts_up):
    """Adaptive max pool of a (C, length) lane-flattened slab, compacted to a
    (C, Kp) f32 result with one 0/1 selection matmul per distinct window shape."""
    by_h = {}
    for v, (nh, nw) in enumerate(variants):
        by_h.setdefault(nh, []).append((v, nw))
    row_max = _window_max(a, sorted(by_h), W, length, shifts_up)
    mm_dtype = sel_ref.dtype
    acc = None
    for nh in sorted(by_h):
        items = by_h[nh]
        col_max = _window_max(row_max[nh], sorted({nw for _, nw in items}),
                              1, length, shifts_up)
        for v, nw in items:
            contrib = jnp.dot(col_max[nw].astype(mm_dtype), sel_ref[v],
                              preferred_element_type=jnp.float32)
            acc = contrib if acc is None else acc + contrib
    return acc  # (C, Kp) f32 (exact selection: disjoint 0/1 matrices)


# ---------------------------------------------------------------------------
# Pallas kernel: whole stage fused, grid = (batch, C_in chunk)
# ---------------------------------------------------------------------------
def _densepsp_stage_kernel(
    x_ref,     # (1, Cc, HW)    compute dtype  input, lanes = h*W + w
    sel1_ref,  # (V1, HW, K1p)  compute dtype  pool1 selection matrices
    u1t_ref,   # (K1p, HWp)     compute dtype  upsample-1 Kronecker matrix^T
    sel2_ref,  # (V2, HWp, K2p) compute dtype  pool2 selection matrices
    wf_ref,    # (C_out, Cc)    compute dtype  BN-folded 1x1 conv weight chunk
    bf_ref,    # (C_out, 1)     f32            BN-folded bias
    u2t_ref,   # (K2p, HWp)     compute dtype  upsample-2 Kronecker matrix^T
    o_ref,     # (1, C_out, HWp) out dtype
    acc_ref,   # (C_out, K2p)   f32 scratch    conv accumulator over C_in chunks
    *,
    W, HW, HWp, variants1, variants2, shifts_up,
):
    c_idx = pl.program_id(1)

    x = x_ref[0]                                              # (Cc, HW)

    # ---- pool1: adaptive max pool (rolled prefix-max + selection matmul) ----
    p1 = _pool_compact(x, sel1_ref, variants1,
                       W=W, length=HW, shifts_up=shifts_up)   # (Cc, K1p) f32

    # ---- bilinear upsample 1 (align_corners=True): one lane-dense matmul ----
    up1 = jnp.dot(p1.astype(u1t_ref.dtype), u1t_ref[...],
                  preferred_element_type=jnp.float32)         # (Cc, HWp) f32

    # ---- pool2 on the upsampled slab -----------------------------------------
    p2 = _pool_compact(up1, sel2_ref, variants2,
                       W=W, length=HWp, shifts_up=shifts_up)  # (Cc, K2p) f32

    # ---- 1x1 conv (BN folded host-side): partial sum over this channel chunk -
    part = jnp.dot(wf_ref[...], p2.astype(wf_ref.dtype),
                   preferred_element_type=jnp.float32)        # (C_out, K2p) f32

    @pl.when(c_idx == 0)
    def _():
        acc_ref[...] = jnp.zeros_like(acc_ref)

    acc_ref[...] += part

    # ---- last chunk: bias + ReLU + final bilinear upsample, lane-dense store -
    @pl.when(c_idx == pl.num_programs(1) - 1)
    def _():
        y = jnp.maximum(acc_ref[...] + bf_ref[...], 0.0)      # (C_out, K2p) f32
        out = jnp.dot(y.astype(u2t_ref.dtype), u2t_ref[...],
                      preferred_element_type=jnp.float32)     # (C_out, HWp) f32
        o_ref[0] = out.astype(o_ref.dtype)


# ---------------------------------------------------------------------------
# Wrapper
# ---------------------------------------------------------------------------
def densepsp_stage(x, params, *, bin_sz, bin_increase=1, eps=1e-5,
                   compute_dtype=jnp.bfloat16, out_dtype=jnp.float32,
                   channel_chunk=256):
    B, C_in, H, W = x.shape
    HW = H * W
    HWp = _round_up(HW, 128)                 # lane-dense (multiple of 128)
    P1, P2 = bin_sz + bin_increase, bin_sz
    K1, K2 = P1 * P1, P2 * P2
    C_out = params["conv_w"].shape[0]

    # Pad pooled-grid sizes to the sublane pack of the compute dtype.
    sub = max(8, 32 // jnp.dtype(compute_dtype).itemsize)
    K1p, K2p = _round_up(K1, sub), _round_up(K2, sub)

    # C_in chunking (bounds input block + f32 temporaries in VMEM; v7x 64 MiB).
    if C_in <= channel_chunk:
        Cc, C_in_pad = C_in, C_in
    else:
        Cc = _round_up(channel_chunk, 128)   # 128-multiple: wf block last dim
        C_in_pad = _round_up(C_in, Cc)
    NC = C_in_pad // Cc

    # Static adaptive-pool windows + selection matrices (grouped by window shape).
    h1, w1 = _adaptive_windows(H, P1), _adaptive_windows(W, P1)
    h2, w2 = _adaptive_windows(H, P2), _adaptive_windows(W, P2)
    sel1, variants1 = _build_selection(h1, w1, W, HW, K1p, compute_dtype)
    sel2, variants2 = _build_selection(h2, w2, W, HWp, K2p, compute_dtype)

    # Bilinear (align_corners=True) Kronecker interpolation matrices, padded.
    u1 = jnp.kron(_interp_matrix(H, P1), _interp_matrix(W, P1))          # (HW, K1)
    u1t = jnp.zeros((K1p, HWp), jnp.float32).at[:K1, :HW].set(u1.T)
    u1t = u1t.astype(compute_dtype)
    u2 = jnp.kron(_interp_matrix(H, P2), _interp_matrix(W, P2))          # (HW, K2)
    u2t = jnp.zeros((K2p, HWp), jnp.float32).at[:K2, :HW].set(u2.T)
    u2t = u2t.astype(compute_dtype)

    # Fold BatchNorm (inference) + conv bias into the 1x1 conv.
    scale = params["bn_gamma"].astype(jnp.float32) * jax.lax.rsqrt(
        params["bn_var"].astype(jnp.float32) + eps)
    wf = params["conv_w"].astype(jnp.float32) * scale[:, None]
    wf = jnp.pad(wf, ((0, 0), (0, C_in_pad - C_in))).astype(compute_dtype)
    bf = (scale * (params["conv_b"].astype(jnp.float32)
                   - params["bn_mean"].astype(jnp.float32))
          + params["bn_beta"].astype(jnp.float32)).reshape(C_out, 1)
    bf = bf.astype(jnp.float32)

    # Input shipped in compute dtype (bf16 default) -> halves the dominant HBM stream.
    x_flat = x.reshape(B, C_in, HW).astype(compute_dtype)
    if C_in_pad != C_in:
        x_flat = jnp.pad(x_flat, ((0, 0), (0, C_in_pad - C_in), (0, 0)))

    # Per-generation VMEM budget (blocks + constants + in-kernel f32 temporaries).
    cby = jnp.dtype(compute_dtype).itemsize
    oby = jnp.dtype(out_dtype).itemsize
    need = (2 * (cby * Cc * HW + oby * C_out * HWp)                      # blocks (2x buf)
            + 2 * cby * (sel1.size + sel2.size + u1t.size + u2t.size + C_out * Cc)
            + 2 * 4 * C_out
            + 6 * 4 * Cc * HWp + 4 * cby * Cc * HW                       # temporaries
            + 4 * C_out * K2p)                                           # accumulator
    try:
        cap = pltpu.get_tpu_info().vmem_capacity_bytes
    except Exception:  # pragma: no cover - conservative fallback (v7x-sized)
        cap = 64 * 2 ** 20
    vmem_limit = int(min(max(32 * 2 ** 20, int(1.5 * need)), int(0.6 * cap)))

    kernel = functools.partial(
        _densepsp_stage_kernel, W=W, HW=HW, HWp=HWp,
        variants1=variants1, variants2=variants2, shifts_up=_roll_shifts_up())

    out = pl.pallas_call(
        kernel,
        out_shape=jax.ShapeDtypeStruct((B, C_out, HWp), out_dtype),
        grid_spec=pltpu.PrefetchScalarGridSpec(
            num_scalar_prefetch=0,
            grid=(B, NC),
            in_specs=[
                pl.BlockSpec((1, Cc, HW), lambda b, c: (b, c, 0)),
                pl.BlockSpec(sel1.shape, lambda b, c: (0, 0, 0)),
                pl.BlockSpec(u1t.shape, lambda b, c: (0, 0)),
                pl.BlockSpec(sel2.shape, lambda b, c: (0, 0, 0)),
                pl.BlockSpec((C_out, Cc), lambda b, c: (0, c)),
                pl.BlockSpec((C_out, 1), lambda b, c: (0, 0)),
                pl.BlockSpec(u2t.shape, lambda b, c: (0, 0)),
            ],
            out_specs=pl.BlockSpec((1, C_out, HWp), lambda b, c: (b, 0, 0)),
            scratch_shapes=[pltpu.VMEM((C_out, K2p), jnp.float32)],
        ),
        compiler_params=pltpu.CompilerParams(
            dimension_semantics=("parallel", "arbitrary"),
            vmem_limit_bytes=vmem_limit,
        ),
    )(x_flat, sel1, u1t, sel2, wf, bf, u2t)

    return out[:, :, :HW].reshape(B, C_out, H, W)


# ---------------------------------------------------------------------------
# Pure-JAX reference (direct semantics) for a correctness check
# ---------------------------------------------------------------------------
def densepsp_stage_ref(x, params, *, bin_sz, bin_increase=1, eps=1e-5):
    B, C, H, W = x.shape
    P1 = bin_sz + bin_increase

    def adaptive_max_pool(t, out_size):
        _, _, Hn, Wn = t.shape
        rows = []
        for i in range(out_size):
            hs = math.floor(i * Hn / out_size)
            he = math.ceil((i + 1) * Hn / out_size)
            cols = []
            for j in range(out_size):
                ws = math.floor(j * Wn / out_size)
                we = math.ceil((j + 1) * Wn / out_size)
                cols.append(jnp.max(t[:, :, hs:he, ws:we], axis=(2, 3)))
            rows.append(jnp.stack(cols, axis=-1))
        return jnp.stack(rows, axis=-2)

    def bilinear(t, Ho, Wo):
        wh = _interp_matrix(Ho, t.shape[2])
        ww = _interp_matrix(Wo, t.shape[3])
        return jnp.einsum("hp,wq,bcpq->bchw", wh, ww, t)

    y = adaptive_max_pool(x, P1)
    y = bilinear(y, H, W)
    y = adaptive_max_pool(y, bin_sz)
    y = jnp.einsum("oc,bchw->bohw", params["conv_w"], y)
    y = y + params["conv_b"][None, :, None, None]
    scale = params["bn_gamma"] / jnp.sqrt(params["bn_var"] + eps)
    y = (y - params["bn_mean"][None, :, None, None]) * scale[None, :, None, None]
    y = y + params["bn_beta"][None, :, None, None]
    y = jnp.maximum(y, 0.0)
    y = bilinear(y, H, W)
    return y


# ---------------------------------------------------------------------------
if __name__ == "__main__":
    B, C_in, C_out, H, W = 2, 4, 8, 16, 16
    bin_sz, bin_increase = 4, 1

    key = jax.random.PRNGKey(0)
    k1, k2, k3, k4, k5, k6, k7 = jax.random.split(key, 7)
    x = jax.random.normal(k1, (B, C_in, H, W), jnp.float32)

    # Deterministic synthetic parameters (Conv2d 1x1 + BatchNorm2d shapes).
    params = {
        "conv_w": 0.2 * jax.random.normal(k2, (C_out, C_in), jnp.float32),
        "conv_b": 0.1 * jax.random.normal(k3, (C_out,), jnp.float32),
        "bn_gamma": 1.0 + 0.1 * jax.random.normal(k4, (C_out,), jnp.float32),
        "bn_beta": 0.1 * jax.random.normal(k5, (C_out,), jnp.float32),
        "bn_mean": 0.1 * jax.random.normal(k6, (C_out,), jnp.float32),
        "bn_var": jnp.abs(jax.random.normal(k7, (C_out,), jnp.float32)) + 0.5,
    }

    ref = densepsp_stage_ref(x, params, bin_sz=bin_sz, bin_increase=bin_increase)

    # Strict check: f32 operands everywhere.
    out32 = densepsp_stage(x, params, bin_sz=bin_sz, bin_increase=bin_increase,
                           compute_dtype=jnp.float32)
    out32 = jax.block_until_ready(out32)
    assert out32.shape == (B, C_out, H, W), out32.shape
    err32 = float(jnp.max(jnp.abs(out32 - ref)))
    assert err32 < 2e-3, f"f32 kernel mismatch vs reference: {err32}"

    # Default path: bf16 input DMA / matmul operands, f32 accumulation.
    outbf = densepsp_stage(x, params, bin_sz=bin_sz, bin_increase=bin_increase,
                           compute_dtype=jnp.bfloat16)
    outbf = jax.block_until_ready(outbf)
    errbf = float(jnp.max(jnp.abs(outbf - ref)))
    assert errbf < 1.5e-1, f"bf16 kernel mismatch vs reference: {errbf}"

    print("KERNEL_OK")
</pallas_src>

<mosaic_0001>
module attributes {stable_mosaic.version = 11 : i64} {
  func.func @_probe(%arg0: memref<8x128xf32, #tpu.memory_space<vmem>>, %arg1: memref<8x128xf32, #tpu.memory_space<vmem>>) attributes {dimension_semantics = [], scalar_prefetch = 0 : i64, scratch_operands = 0 : i64, tpu.core_type = #tpu.core_type<tc>} {
    %c0 = arith.constant 0 : index
    %c0_0 = arith.constant 0 : index
    %0 = vector.load %arg0[%c0, %c0_0] : memref<8x128xf32, #tpu.memory_space<vmem>>, vector<8x128xf32>
    %c1_i32 = arith.constant 1 : i32
    %1 = tpu.dynamic_rotate %0 by %c1_i32 dim 1 : vector<8x128xf32>, i32 -> vector<8x128xf32>
    %c0_1 = arith.constant 0 : index
    %c0_2 = arith.constant 0 : index
    %2 = vector.load %arg1[%c0_1, %c0_2] : memref<8x128xf32, #tpu.memory_space<vmem>>, vector<8x128xf32>
    tpu.vector_store %arg1[%c0_1, %c0_2], %1 {strides = array<i32>} : memref<8x128xf32, #tpu.memory_space<vmem>>, vector<8x128xf32>,
    return
  }
}

</mosaic_0001>

<llo_original>
// kernel: tpu_custom_call.1
$region0: #{tpu_custom_call.1}
  #allocation0 [shape = 'u32[]', space=smem, size = 0x4, offset = 0x4, fixed_abs, tag = 'smem constant byte address 0x4 - core index']
  #allocation1 [shape = 'u32[144,128]{1,0:T(1,128)}', space=vmem, size = 0x12000, scoped, tag = 'internal scratch']
  %s0 = inlined_call_operand.hbm [shape: f32[8,128], index: 0, kind: input, shape index: {}]
  %s1 = inlined_call_operand.hbm [shape: f32[8,128], index: 1, kind: output, shape index: {}]
  %s2 = sld [smem:[#allocation0]]
  $region18: #{tpu_custom_call.1} parent=0
    _
  %s4 = ssub.s32 1, %s2
  %s5 = scalar_select 0, %s4, %s2
  $region1: #{tpu_custom_call.1} parent=0
    #allocation2 [shape = 'u8[4096]{0}', space=vmem, size = 0x1000, scoped, tag = 'input window, operand 0, single buffered']
    #allocation3 [shape = 's32[1]{0}', space=sflag, size = 0x4, scoped, tag = 'scoped memory for tpu_custom_call.1']
    #allocation4 [shape = 's32[1]{0}', space=sflag, size = 0x4, scoped, tag = 'scoped memory for tpu_custom_call.1']
    #allocation5 [shape = 'u8[4096]{0}', space=vmem, size = 0x1000, scoped, tag = 'output window, operand 0, single buffered']
    %6 = vsyncpa [#allocation3], 0
    %7 = vsyncpa [#allocation4], 0
    // Predicated region
    $region2: #{tpu_custom_call.1} parent=1 // pred_check
      _
    $region3: #{tpu_custom_call.1} parent=1 // pred_check_branch
      %9 = sbr.rel (0) target = $region5
    $region4: #{tpu_custom_call.1} parent=1 // pred_region
      %s11 = ssub.s32 128, 128
      %12 = vsyncadd [#allocation3], %s11
      %s14 = sshll.u32 [#allocation2], 4
      %s15 = int_to_ptr.vmem [resolvable:$true] %s14
      %17 = dma.hbm_to_vmem [thread:$0]  %s0, 128, %s15, [#allocation3]
    $region5: #{tpu_custom_call.1} parent=1 // pred_fallthru
      _
    // Predicated region
    $region6: #{tpu_custom_call.1} parent=1 // pred_check
      _
    $region7: #{tpu_custom_call.1} parent=1 // pred_check_branch
      %19 = sbr.rel (0) target = $region9
    $region8: #{tpu_custom_call.1} parent=1 // pred_region
      %20 = dma.done [#allocation3], 128
    $region9: #{tpu_custom_call.1} parent=1 // pred_fallthru
      _
    %v21 = vld [vmem:[#allocation2] sm:$0xff]
    %22 = vrot.lane.b32.xlu0 %v21, 1
    %v23 = vpop.permute.xlu0 %22
    %24 = vst [vmem:[#allocation5] sm:$0xff] %v23
    // Predicated region
    $region10: #{tpu_custom_call.1} parent=1 // pred_check
      _
    $region11: #{tpu_custom_call.1} parent=1 // pred_check_branch
      %26 = sbr.rel (0) target = $region13
    $region12: #{tpu_custom_call.1} parent=1 // pred_region
      %s28 = ssub.s32 128, 128
      %29 = vsyncadd [#allocation4], %s28
      %s31 = sshll.u32 [#allocation5], 4
      %s32 = int_to_ptr.vmem [resolvable:$true] %s31
      %34 = dma.vmem_to_hbm [thread:$0]  %s32, 128, %s1, [#allocation4]
    $region13: #{tpu_custom_call.1} parent=1 // pred_fallthru
      _
    // Predicated region
    $region14: #{tpu_custom_call.1} parent=1 // pred_check
      _
    $region15: #{tpu_custom_call.1} parent=1 // pred_check_branch
      %36 = sbr.rel (0) target = $region17
    $region16: #{tpu_custom_call.1} parent=1 // pred_region
      %37 = dma.done [#allocation4], 128
    $region17: #{tpu_custom_call.1} parent=1 // pred_fallthru
      _
    %38 = vsyncpa [#allocation3], 1
    %39 = vsyncpa [#allocation4], 1

</llo_original>
